<compile_context>
chip_gen: v7x
topology: tpu7x:2x2x1
jax: 0.10.0
libtpu: 0.0.40
codegen_flags: <defaults>
</compile_context>

<pallas_src>
import functools

import jax
import jax.numpy as jnp
from jax.experimental import pallas as pl
from jax.experimental.pallas import tpu as pltpu


# Contract dim 1 of both operands -> lhs @ rhs^T on the MXU ("NT" matmul).
_NT_DIMS = (((1,), (1,)), ((), ()))


def diabetes_mlp_kernel(x_ref, w1_ref, b1_ref, w2_ref, b2_ref,
                        w3_ref, b3_ref, o_ref, *, chunk):
    # Weights/biases are tiny and VMEM-resident; load once per grid step.
    w1 = w1_ref[...]; b1 = b1_ref[...]        # [16, F], [16, 1]
    w2 = w2_ref[...]; b2 = b2_ref[...]        # [8, 16], [8, 1]
    w3 = w3_ref[...]; b3 = b3_ref[...]        # [1, 8],  [1, 1]

    tb = x_ref.shape[0]
    num_chunks = tb // chunk                  # tb is a multiple of chunk

    def body(c, carry):
        col = pl.multiple_of(c * chunk, chunk)
        xs = x_ref[pl.ds(col, chunk), :]      # [chunk, F]

        # fc1 + ReLU: [16, F] x [chunk, F]^T -> [16, chunk] (batch on lanes).
        h1 = jax.lax.dot_general(w1, xs, _NT_DIMS,
                                 preferred_element_type=jnp.float32)
        h1 = jnp.maximum(h1 + b1, 0.0)        # dropout = identity (eval)

        # fc2 + ReLU.
        h2 = jnp.dot(w2, h1, preferred_element_type=jnp.float32)
        h2 = jnp.maximum(h2 + b2, 0.0)        # dropout = identity (eval)

        # fc3 + sigmoid -> lane-dense [1, chunk] store.
        z = jnp.dot(w3, h2, preferred_element_type=jnp.float32) + b3
        o_ref[:, pl.ds(col, chunk)] = jax.nn.sigmoid(z).astype(o_ref.dtype)
        return carry

    jax.lax.fori_loop(0, num_chunks, body, 0, unroll=(num_chunks <= 8))


def _round_up(n, m):
    return pl.cdiv(n, m) * m


def diabetes_nn_forward(x, params, block_b=32768, lane_chunk=512):
    """x: [B, input_size] float32; params: dict of w1,b1,w2,b2,w3,b3 with
    weights in PyTorch [out, in] layout and biases as [out, 1] columns."""
    w1, b1, w2, b2, w3, b3 = (params["w1"], params["b1"], params["w2"],
                              params["b2"], params["w3"], params["b3"])
    B, F = x.shape

    # Batch tile: multiple of 128 lanes (defensive round-up), capped at the
    # rounded batch.  If one tile would cover the whole batch, split in two so
    # the "parallel" grid axis can shard across v7x's two TensorCores.
    tb = max(128, _round_up(block_b, 128))
    b_pad = _round_up(B, 128)
    if tb >= b_pad and b_pad >= 256:
        tb = _round_up(pl.cdiv(B, 2), 128)
    else:
        tb = min(tb, b_pad)
    num_tiles = pl.cdiv(B, tb)

    # Inner lane-chunk (keeps h1/h2 in vregs); must divide tb (tb % 128 == 0).
    chunk = lane_chunk if (tb % lane_chunk == 0) else 128

    resident = lambda a: pl.BlockSpec(a.shape, lambda i: (0, 0))
    kernel = functools.partial(diabetes_mlp_kernel, chunk=chunk)

    out = pl.pallas_call(
        kernel,
        out_shape=jax.ShapeDtypeStruct((1, B), jnp.float32),
        grid=(num_tiles,),
        in_specs=[
            # x streamed directly in native [B, F] layout; ragged last block
            # is handled by Pallas (stale tail of the block is computed on but
            # clipped on the output writeback).
            pl.BlockSpec((tb, F), lambda i: (i, 0)),
            resident(w1), resident(b1),
            resident(w2), resident(b2),
            resident(w3), resident(b3),
        ],
        out_specs=pl.BlockSpec((1, tb), lambda i: (0, i)),
        compiler_params=pltpu.CompilerParams(
            dimension_semantics=("parallel",)),
    )(x, w1, b1, w2, b2, w3, b3)

    # (1, B) -> (B, 1): free reshape back to the PyTorch output shape.
    return out.T


def init_params(key, input_size):
    """Deterministic init mimicking nn.Linear's U(-1/sqrt(fan_in), 1/sqrt(fan_in)).

    Weights stored in PyTorch [out, in] layout; biases as [out, 1] columns
    (broadcast along the lane/batch axis inside the kernel)."""
    def linear(key, fan_in, fan_out):
        kw, kb = jax.random.split(key)
        bound = 1.0 / jnp.sqrt(jnp.float32(fan_in))
        w = jax.random.uniform(kw, (fan_out, fan_in), jnp.float32, -bound, bound)
        b = jax.random.uniform(kb, (fan_out, 1), jnp.float32, -bound, bound)
        return w, b

    k1, k2, k3 = jax.random.split(key, 3)
    w1, b1 = linear(k1, input_size, 16)
    w2, b2 = linear(k2, 16, 8)
    w3, b3 = linear(k3, 8, 1)
    return {"w1": w1, "b1": b1, "w2": w2, "b2": b2, "w3": w3, "b3": b3}


def reference_forward(x, p):
    h1 = jnp.maximum(x @ p["w1"].T + p["b1"].T, 0.0)
    h2 = jnp.maximum(h1 @ p["w2"].T + p["b2"].T, 0.0)
    return jax.nn.sigmoid(h2 @ p["w3"].T + p["b3"].T)


if __name__ == "__main__":
    key = jax.random.PRNGKey(0)
    kx, kp, kx2, kx3 = jax.random.split(key, 4)

    input_size = 8   # e.g. Pima diabetes dataset has 8 features
    params = init_params(kp, input_size)

    # Small batch: single tile, batch block larger than B (ragged clipping).
    x = jax.random.normal(kx, (8, input_size), dtype=jnp.float32)
    out = jax.block_until_ready(diabetes_nn_forward(x, params))
    ref = reference_forward(x, params)
    assert out.shape == (8, 1)
    assert jnp.allclose(out, ref, atol=1e-5, rtol=1e-5)

    # Multi-tile grid with a non-128-multiple block_b (defensive round-up)
    # and a ragged last block on both input and output.
    x2 = jax.random.normal(kx2, (300, input_size), dtype=jnp.float32)
    out2 = jax.block_until_ready(diabetes_nn_forward(x2, params, block_b=130))
    ref2 = reference_forward(x2, params)
    assert out2.shape == (300, 1)
    assert jnp.allclose(out2, ref2, atol=1e-5, rtol=1e-5)

    # Default (auto-split) path: 2 parallel tiles + 512-wide inner chunks.
    x3 = jax.random.normal(kx3, (2048, input_size), dtype=jnp.float32)
    out3 = jax.block_until_ready(diabetes_nn_forward(x3, params))
    ref3 = reference_forward(x3, params)
    assert out3.shape == (2048, 1)
    assert jnp.allclose(out3, ref3, atol=1e-5, rtol=1e-5)

    print("KERNEL_OK")
</pallas_src>

<mosaic_0001>
module attributes {stable_mosaic.version = 11 : i64} {
  func.func @diabetes_mlp_kernel(%arg0: i32, %arg1: memref<128x8xf32, #tpu.memory_space<vmem>>, %arg2: memref<16x8xf32, #tpu.memory_space<vmem>>, %arg3: memref<16x1xf32, #tpu.memory_space<vmem>>, %arg4: memref<8x16xf32, #tpu.memory_space<vmem>>, %arg5: memref<8x1xf32, #tpu.memory_space<vmem>>, %arg6: memref<1x8xf32, #tpu.memory_space<vmem>>, %arg7: memref<1x1xf32, #tpu.memory_space<vmem>>, %arg8: memref<1x128xf32, #tpu.memory_space<vmem>>) attributes {dimension_semantics = [#tpu.dimension_semantics<parallel>], iteration_bounds = array<i64: 1>, scalar_prefetch = 0 : i64, scratch_operands = 0 : i64, tpu.core_type = #tpu.core_type<tc>, window_params = [{transform_indices = @transform_0, window_bounds = array<i64: 128, 8>}, {pipeline_mode = #tpu.pipeline_mode<synchronous>, transform_indices = @transform_1, window_bounds = array<i64: 16, 8>}, {pipeline_mode = #tpu.pipeline_mode<synchronous>, transform_indices = @transform_2, window_bounds = array<i64: 16, 1>}, {pipeline_mode = #tpu.pipeline_mode<synchronous>, transform_indices = @transform_3, window_bounds = array<i64: 8, 16>}, {pipeline_mode = #tpu.pipeline_mode<synchronous>, transform_indices = @transform_4, window_bounds = array<i64: 8, 1>}, {pipeline_mode = #tpu.pipeline_mode<synchronous>, transform_indices = @transform_5, window_bounds = array<i64: 1, 8>}, {pipeline_mode = #tpu.pipeline_mode<synchronous>, transform_indices = @transform_6, window_bounds = array<i64: 1, 1>}, {transform_indices = @transform_7, window_bounds = array<i64: 1, 128>}]} {
    %c0 = arith.constant 0 : index
    %c0_0 = arith.constant 0 : index
    %0 = vector.load %arg2[%c0, %c0_0] : memref<16x8xf32, #tpu.memory_space<vmem>>, vector<16x8xf32>
    %c0_1 = arith.constant 0 : index
    %c0_2 = arith.constant 0 : index
    %1 = vector.load %arg3[%c0_1, %c0_2] : memref<16x1xf32, #tpu.memory_space<vmem>>, vector<16x1xf32>
    %c0_3 = arith.constant 0 : index
    %c0_4 = arith.constant 0 : index
    %2 = vector.load %arg4[%c0_3, %c0_4] : memref<8x16xf32, #tpu.memory_space<vmem>>, vector<8x16xf32>
    %c0_5 = arith.constant 0 : index
    %c0_6 = arith.constant 0 : index
    %3 = vector.load %arg5[%c0_5, %c0_6] : memref<8x1xf32, #tpu.memory_space<vmem>>, vector<8x1xf32>
    %c0_7 = arith.constant 0 : index
    %c0_8 = arith.constant 0 : index
    %4 = vector.load %arg6[%c0_7, %c0_8] : memref<1x8xf32, #tpu.memory_space<vmem>>, vector<1x8xf32>
    %c0_9 = arith.constant 0 : index
    %c0_10 = arith.constant 0 : index
    %5 = vector.load %arg7[%c0_9, %c0_10] : memref<1x1xf32, #tpu.memory_space<vmem>>, vector<1x1xf32>
    %c0_i32 = arith.constant 0 : i32
    %c128_i32 = arith.constant 128 : i32
    %6 = arith.muli %c0_i32, %c128_i32 : i32
    %7 = tpu.assume_multiple %6, 128 : i32
    %8 = arith.index_cast %7 : i32 to index
    %c0_11 = arith.constant 0 : index
    %9 = vector.load %arg1[%8, %c0_11] : memref<128x8xf32, #tpu.memory_space<vmem>>, vector<128x8xf32>
    %cst = arith.constant dense<0.000000e+00> : vector<16x128xf32>
    %10 = tpu.matmul %0, %9, %cst {dimension_numbers = #tpu.dot_dimension_numbers<[1], [1], [0], [0], [0, 0, 1, 0], [], []>} : vector<16x8xf32>, vector<128x8xf32>, vector<16x128xf32> -> vector<16x128xf32>
    %11 = vector.broadcast %1 : vector<16x1xf32> to vector<16x128xf32>
    %12 = arith.addf %10, %11 : vector<16x128xf32>
    %cst_12 = arith.constant 0.000000e+00 : f32
    %13 = vector.broadcast %cst_12 : f32 to vector<16x128xf32>
    %14 = arith.maximumf %12, %13 : vector<16x128xf32>
    %cst_13 = arith.constant dense<0.000000e+00> : vector<8x128xf32>
    %15 = tpu.matmul %2, %14, %cst_13 {dimension_numbers = #tpu.dot_dimension_numbers<[1], [0], [0], [1], [0, 0, 1, 1], [], []>} : vector<8x16xf32>, vector<16x128xf32>, vector<8x128xf32> -> vector<8x128xf32>
    %16 = vector.broadcast %3 : vector<8x1xf32> to vector<8x128xf32>
    %17 = arith.addf %15, %16 : vector<8x128xf32>
    %cst_14 = arith.constant 0.000000e+00 : f32
    %18 = vector.broadcast %cst_14 : f32 to vector<8x128xf32>
    %19 = arith.maximumf %17, %18 : vector<8x128xf32>
    %cst_15 = arith.constant dense<0.000000e+00> : vector<1x128xf32>
    %20 = tpu.matmul %4, %19, %cst_15 {dimension_numbers = #tpu.dot_dimension_numbers<[1], [0], [0], [1], [0, 0, 1, 1], [], []>} : vector<1x8xf32>, vector<8x128xf32>, vector<1x128xf32> -> vector<1x128xf32>
    %21 = vector.broadcast %5 : vector<1x1xf32> to vector<1x128xf32>
    %22 = arith.addf %20, %21 : vector<1x128xf32>
    %23 = arith.negf %22 : vector<1x128xf32>
    %24 = math.exp %23 : vector<1x128xf32>
    %cst_16 = arith.constant 1.000000e+00 : f32
    %25 = vector.broadcast %cst_16 : f32 to vector<1x128xf32>
    %26 = arith.addf %25, %24 : vector<1x128xf32>
    %27 = arith.divf %25, %26 : vector<1x128xf32>
    %c0_17 = arith.constant 0 : index
    %28 = arith.index_cast %7 : i32 to index
    %29 = vector.load %arg8[%c0_17, %28] : memref<1x128xf32, #tpu.memory_space<vmem>>, vector<1x128xf32>
    tpu.vector_store %arg8[%c0_17, %28], %27 {strides = array<i32>} : memref<1x128xf32, #tpu.memory_space<vmem>>, vector<1x128xf32>,
    %c1_i32 = arith.constant 1 : i32
    return
  }
  func.func @transform_0(%arg0: i32) -> (i32, i32) {
    %c0_i32 = arith.constant 0 : i32
    %c0_i32_0 = arith.constant 0 : i32
    return %arg0, %c0_i32 : i32, i32
  }
  func.func @transform_1(%arg0: i32) -> (i32, i32) {
    %c0_i32 = arith.constant 0 : i32
    %c0_i32_0 = arith.constant 0 : i32
    %c0_i32_1 = arith.constant 0 : i32
    return %c0_i32, %c0_i32_0 : i32, i32
  }
  func.func @transform_2(%arg0: i32) -> (i32, i32) {
    %c0_i32 = arith.constant 0 : i32
    %c0_i32_0 = arith.constant 0 : i32
    %c0_i32_1 = arith.constant 0 : i32
    return %c0_i32, %c0_i32_0 : i32, i32
  }
  func.func @transform_3(%arg0: i32) -> (i32, i32) {
    %c0_i32 = arith.constant 0 : i32
    %c0_i32_0 = arith.constant 0 : i32
    %c0_i32_1 = arith.constant 0 : i32
    return %c0_i32, %c0_i32_0 : i32, i32
  }
  func.func @transform_4(%arg0: i32) -> (i32, i32) {
    %c0_i32 = arith.constant 0 : i32
    %c0_i32_0 = arith.constant 0 : i32
    %c0_i32_1 = arith.constant 0 : i32
    return %c0_i32, %c0_i32_0 : i32, i32
  }
  func.func @transform_5(%arg0: i32) -> (i32, i32) {
    %c0_i32 = arith.constant 0 : i32
    %c0_i32_0 = arith.constant 0 : i32
    %c0_i32_1 = arith.constant 0 : i32
    return %c0_i32, %c0_i32_0 : i32, i32
  }
  func.func @transform_6(%arg0: i32) -> (i32, i32) {
    %c0_i32 = arith.constant 0 : i32
    %c0_i32_0 = arith.constant 0 : i32
    %c0_i32_1 = arith.constant 0 : i32
    return %c0_i32, %c0_i32_0 : i32, i32
  }
  func.func @transform_7(%arg0: i32) -> (i32, i32) {
    %c0_i32 = arith.constant 0 : i32
    %c0_i32_0 = arith.constant 0 : i32
    return %c0_i32, %arg0 : i32, i32
  }
}

</mosaic_0001>

<llo_original>
// kernel: tpu_custom_call.1
$region0: #{tpu_custom_call.1}
  #allocation0 [shape = 'u32[]', space=smem, size = 0x4, offset = 0x4, fixed_abs, tag = 'smem constant byte address 0x4 - core index']
  #allocation1 [shape = 'u32[144,128]{1,0:T(1,128)}', space=vmem, size = 0x12000, scoped, tag = 'internal scratch']
  #allocation2 [shape = 'f32[1,1]{1,0:T(1,128)S(1)}', space=vmem, size = 0x200, scoped, tag = 'scoped memory for tpu_custom_call.1']
  %s0 = inlined_call_operand.vmem [shape: f32[8,8], index: 0, kind: input, shape index: {}]
  %s1 = inlined_call_operand.vmem [shape: f32[16,8], index: 1, kind: input, shape index: {}]
  %s2 = inlined_call_operand.vmem [shape: f32[16,1], index: 2, kind: input, shape index: {}]
  %s3 = inlined_call_operand.vmem [shape: f32[8,16], index: 3, kind: input, shape index: {}]
  %s4 = inlined_call_operand.vmem [shape: f32[8,1], index: 4, kind: input, shape index: {}]
  %s5 = inlined_call_operand.vmem [shape: f32[1,8], index: 5, kind: input, shape index: {}]
  %s6 = inlined_call_operand.<no memory space> [shape: f32[1,1], index: 6, kind: input, shape index: {}]
  %s7 = inlined_call_operand.hbm [shape: f32[1,8], index: 7, kind: output, shape index: {}]
  %s8 = sld [smem:[#allocation0]]
  $region38: #{tpu_custom_call.1} parent=0
    _
  %s10 = ssub.s32 1, %s8
  %s11 = scalar_select 0, %s10, %s8
  %v12 = vstv %s6
  %13 = vst [vmem:[#allocation2] sm:$0x1] %v12
  $region1: #{tpu_custom_call.1} parent=0
    #allocation3 [shape = 'u8[512]{0}', space=vmem, size = 0x400, scoped, tag = 'output window, operand 0, single buffered']
    #allocation4 [shape = 's32[1]{0}', space=sflag, size = 0x4, scoped, tag = 'scoped memory for tpu_custom_call.1']
    %14 = vsyncpa [#allocation4], 0
    // Predicated region
    $region2: #{tpu_custom_call.1} parent=1 // pred_check
      _
    $region3: #{tpu_custom_call.1} parent=1 // pred_check_branch
      %16 = sbr.rel (0) target = $region5
    $region4: #{tpu_custom_call.1} parent=1 // pred_region
      _
    $region5: #{tpu_custom_call.1} parent=1 // pred_fallthru
      _
    // Predicated region
    $region6: #{tpu_custom_call.1} parent=1 // pred_check
      _
    $region7: #{tpu_custom_call.1} parent=1 // pred_check_branch
      %18 = sbr.rel (0) target = $region9
    $region8: #{tpu_custom_call.1} parent=1 // pred_region
      _
    $region9: #{tpu_custom_call.1} parent=1 // pred_fallthru
      _
    // Predicated region
    $region10: #{tpu_custom_call.1} parent=1 // pred_check
      _
    $region11: #{tpu_custom_call.1} parent=1 // pred_check_branch
      %20 = sbr.rel (0) target = $region13
    $region12: #{tpu_custom_call.1} parent=1 // pred_region
      _
    $region13: #{tpu_custom_call.1} parent=1 // pred_fallthru
      _
    // Predicated region
    $region14: #{tpu_custom_call.1} parent=1 // pred_check
      _
    $region15: #{tpu_custom_call.1} parent=1 // pred_check_branch
      %22 = sbr.rel (0) target = $region17
    $region16: #{tpu_custom_call.1} parent=1 // pred_region
      _
    $region17: #{tpu_custom_call.1} parent=1 // pred_fallthru
      _
    // Predicated region
    $region18: #{tpu_custom_call.1} parent=1 // pred_check
      _
    $region19: #{tpu_custom_call.1} parent=1 // pred_check_branch
      %24 = sbr.rel (0) target = $region21
    $region20: #{tpu_custom_call.1} parent=1 // pred_region
      _
    $region21: #{tpu_custom_call.1} parent=1 // pred_fallthru
      _
    // Predicated region
    $region22: #{tpu_custom_call.1} parent=1 // pred_check
      _
    $region23: #{tpu_custom_call.1} parent=1 // pred_check_branch
      %26 = sbr.rel (0) target = $region25
    $region24: #{tpu_custom_call.1} parent=1 // pred_region
      _
    $region25: #{tpu_custom_call.1} parent=1 // pred_fallthru
      _
    // Predicated region
    $region26: #{tpu_custom_call.1} parent=1 // pred_check
      _
    $region27: #{tpu_custom_call.1} parent=1 // pred_check_branch
      %28 = sbr.rel (0) target = $region29
    $region28: #{tpu_custom_call.1} parent=1 // pred_region
      _
    $region29: #{tpu_custom_call.1} parent=1 // pred_fallthru
      _
    %v29 = vld [vmem:[%s1] sm:$0xff]
    %v30 = vld [vmem:[%s1 + $0x8] sm:$0xff]
    %v31 = vld [vmem:[%s2] sm:$0xff]
    %v32 = vld [vmem:[%s2 + $0x8] sm:$0xff]
    %v33 = vld [vmem:[%s3] sm:$0xff]
    %v34 = vld [vmem:[%s4] sm:$0xff]
    %v35 = vld [vmem:[%s5] sm:$0x1]
    %v36 = vld [vmem:[#allocation2] sm:$0x1]
    %v37 = vld [vmem:[%s0] sm:$0xff]
    %v38 = vld [vmem:[%s0 + $0x8] sm:$0xff]
    %v39 = vld [vmem:[%s0 + $0x10] sm:$0xff]
    %v40 = vld [vmem:[%s0 + $0x18] sm:$0xff]
    %v41 = vld [vmem:[%s0 + $0x20] sm:$0xff]
    %v42 = vld [vmem:[%s0 + $0x28] sm:$0xff]
    %v43 = vld [vmem:[%s0 + $0x30] sm:$0xff]
    %v44 = vld [vmem:[%s0 + $0x38] sm:$0xff]
    %v45 = vld [vmem:[%s0 + $0x40] sm:$0xff]
    %v46 = vld [vmem:[%s0 + $0x48] sm:$0xff]
    %v47 = vld [vmem:[%s0 + $0x50] sm:$0xff]
    %v48 = vld [vmem:[%s0 + $0x58] sm:$0xff]
    %v49 = vld [vmem:[%s0 + $0x60] sm:$0xff]
    %v50 = vld [vmem:[%s0 + $0x68] sm:$0xff]
    %v51 = vld [vmem:[%s0 + $0x70] sm:$0xff]
    %v52 = vld [vmem:[%s0 + $0x78] sm:$0xff]
    %54 = vset.pattern.permute.xlu0 0
    %55 = vperm.xlu0 %54, %v31
    %v56 = vpop.permute.xlu0 %55
    %59 = vset.pattern.permute.xlu0 0
    %60 = vperm.xlu0 %59, %v32
    %v61 = vpop.permute.xlu0 %60
    %vm63 = vcmask 64512
    %v65 = vsel %vm63, %v29, 0
    %v68 = vsel %vm63, %v30, 0
    %v71 = vsel %vm63, %v37, 0
    %v74 = vsel %vm63, %v38, 0
    %v77 = vsel %vm63, %v39, 0
    %v80 = vsel %vm63, %v40, 0
    %v83 = vsel %vm63, %v41, 0
    %v86 = vsel %vm63, %v42, 0
    %v89 = vsel %vm63, %v43, 0
    %v92 = vsel %vm63, %v44, 0
    %v95 = vsel %vm63, %v45, 0
    %v98 = vsel %vm63, %v46, 0
    %v101 = vsel %vm63, %v47, 0
    %v104 = vsel %vm63, %v48, 0
    %v107 = vsel %vm63, %v49, 0
    %v110 = vsel %vm63, %v50, 0
    %v113 = vsel %vm63, %v51, 0
    %v116 = vsel %vm63, %v52, 0
    %118 = vmatprep.subr.mxu0 0.0
    %119 = vmatpush1.xpose.msra.mxu0 %v71
    %120 = vmatprep.subr.mxu0 0.0
    %121 = vmatpush1.xpose.msra.mxu0 %v74
    %122 = vmatprep.subr.mxu0 0.0
    %123 = vmatpush1.xpose.msra.mxu0 %v77
    %124 = vmatprep.subr.mxu0 0.0
    %125 = vmatpush1.xpose.msra.mxu0 %v80
    %126 = vmatprep.subr.mxu0 0.0
    %127 = vmatpush1.xpose.msra.mxu0 %v83
    %128 = vmatprep.subr.mxu0 0.0
    %129 = vmatpush1.xpose.msra.mxu0 %v86
    %130 = vmatprep.subr.mxu0 0.0
    %131 = vmatpush1.xpose.msra.mxu0 %v89
    %132 = vmatprep.subr.mxu0 0.0
    %133 = vmatpush1.xpose.msra.mxu0 %v92
    %134 = vmatprep.subr.mxu0 0.0
    %135 = vmatpush1.xpose.msra.mxu0 %v95
    %136 = vmatprep.subr.mxu0 0.0
    %137 = vmatpush1.xpose.msra.mxu0 %v98
    %138 = vmatprep.subr.mxu0 0.0
    %139 = vmatpush1.xpose.msra.mxu0 %v101
    %140 = vmatprep.subr.mxu0 0.0
    %141 = vmatpush1.xpose.msra.mxu0 %v104
    %142 = vmatprep.subr.mxu0 0.0
    %143 = vmatpush1.xpose.msra.mxu0 %v107
    %144 = vmatprep.subr.mxu0 0.0
    %145 = vmatpush1.xpose.msra.mxu0 %v110
    %146 = vmatprep.subr.mxu0 0.0
    %147 = vmatpush1.xpose.msra.mxu0 %v113
    %148 = vmatprep.subr.mxu0 0.0
    %149 = vmatpush1.xpose.msra.mxu0 %v116
    %150 = vmatprep.subr.mxu0 0.0
    %151 = vmatpush1.xpose.msra.mxu0 0.0
    %152 = vmatprep.subr.mxu0 0.0
    %153 = vmatpush1.xpose.msra.mxu0 0.0
    %154 = vmatprep.subr.mxu0 0.0
    %155 = vmatpush1.xpose.msra.mxu0 0.0
    %156 = vmatprep.subr.mxu0 0.0
    %157 = vmatpush1.xpose.msra.mxu0 0.0
    %158 = vmatprep.subr.mxu0 0.0
    %159 = vmatpush1.xpose.msra.mxu0 0.0
    %160 = vmatprep.subr.mxu0 0.0
    %161 = vmatpush1.xpose.msra.mxu0 0.0
    %162 = vmatprep.subr.mxu0 0.0
    %163 = vmatpush1.xpose.msra.mxu0 0.0
    %164 = vmatprep.subr.mxu0 0.0
    %165 = vmatpush1.xpose.msra.mxu0 0.0
    %166 = vmatprep.subr.mxu0 0.0
    %167 = vmatpush1.xpose.msra.mxu0 0.0
    %168 = vmatprep.subr.mxu0 0.0
    %169 = vmatpush1.xpose.msra.mxu0 0.0
    %170 = vmatprep.subr.mxu0 0.0
    %171 = vmatpush1.xpose.msra.mxu0 0.0
    %172 = vmatprep.subr.mxu0 0.0
    %173 = vmatpush1.xpose.msra.mxu0 0.0
    %174 = vmatprep.subr.mxu0 0.0
    %175 = vmatpush1.xpose.msra.mxu0 0.0
    %176 = vmatprep.subr.mxu0 0.0
    %177 = vmatpush1.xpose.msra.mxu0 0.0
    %178 = vmatprep.subr.mxu0 0.0
    %179 = vmatpush1.xpose.msra.mxu0 0.0
    %180 = vmatprep.subr.mxu0 0.0
    %181 = vmatpush1.xpose.msra.mxu0 0.0
    %182 = vmatprep.mubr.f32.mxu0 0.0
    %183 = vmatmul.mubr.f32.gmra.mrb[0].mxu0 %v65
    %v184 = vpop.f32.mrb[0].mxu0
    %v185 = vadd.f32 %v56, %v184
    %v186 = vpop.f32.mrb[0].mxu0
    %187 = vmatprep.mubr.f32.mxu0 0.0
    %188 = vmatmul.mubr.f32.gmra.mrb[0].mxu0 %v68
    %v189 = vpop.f32.mrb[0].mxu0
    %v190 = vadd.f32 %v61, %v189
    %v191 = vpop.f32.mrb[0].mxu0
    %192 = vdwg.mxu0
    %v193 = vmax.f32 %v185, 0.0
    %v194 = vmax.f32 %v190, 0.0
    %196 = vset.pattern.permute.xlu0 0
    %197 = vperm.xlu0 %196, %v34
    %v198 = vpop.permute.xlu0 %197
    %vm200 = vcmask 130048
    %v202 = vsel %vm200, %v33, 0
    %204 = vmatprep.subr.mxu0 0.0
    %205 = vmatpush1.msra.mxu0 %v193
    %206 = vmatprep.subr.mxu0 0.0
    %207 = vmatpush1.msra.mxu0 %v194
    %208 = vmatprep.subr.mxu0 0.0
    %209 = vmatpush1.msra.mxu0 0.0
    %210 = vmatprep.subr.mxu0 0.0
    %211 = vmatpush1.msra.mxu0 0.0
    %212 = vmatprep.subr.mxu0 0.0
    %213 = vmatpush1.msra.mxu0 0.0
    %214 = vmatprep.subr.mxu0 0.0
    %215 = vmatpush1.msra.mxu0 0.0
    %216 = vmatprep.subr.mxu0 0.0
    %217 = vmatpush1.msra.mxu0 0.0
    %218 = vmatprep.subr.mxu0 0.0
    %219 = vmatpush1.msra.mxu0 0.0
    %220 = vmatprep.subr.mxu0 0.0
    %221 = vmatpush1.msra.mxu0 0.0
    %222 = vmatprep.subr.mxu0 0.0
    %223 = vmatpush1.msra.mxu0 0.0
    %224 = vmatprep.subr.mxu0 0.0
    %225 = vmatpush1.msra.mxu0 0.0
    %226 = vmatprep.subr.mxu0 0.0
    %227 = vmatpush1.msra.mxu0 0.0
    %228 = vmatprep.subr.mxu0 0.0
    %229 = vmatpush1.msra.mxu0 0.0
    %230 = vmatprep.subr.mxu0 0.0
    %231 = vmatpush1.msra.mxu0 0.0
    %232 = vmatprep.subr.mxu0 0.0
    %233 = vmatpush1.msra.mxu0 0.0
    %234 = vmatprep.subr.mxu0 0.0
    %235 = vmatpush1.msra.mxu0 0.0
    %236 = vmatprep.subr.mxu0 0.0
    %237 = vmatpush1.msra.mxu0 0.0
    %238 = vmatprep.subr.mxu0 0.0
    %239 = vmatpush1.msra.mxu0 0.0
    %240 = vmatprep.subr.mxu0 0.0
    %241 = vmatpush1.msra.mxu0 0.0
    %242 = vmatprep.subr.mxu0 0.0
    %243 = vmatpush1.msra.mxu0 0.0
    %244 = vmatprep.subr.mxu0 0.0
    %245 = vmatpush1.msra.mxu0 0.0
    %246 = vmatprep.subr.mxu0 0.0
    %247 = vmatpush1.msra.mxu0 0.0
    %248 = vmatprep.subr.mxu0 0.0
    %249 = vmatpush1.msra.mxu0 0.0
    %250 = vmatprep.subr.mxu0 0.0
    %251 = vmatpush1.msra.mxu0 0.0
    %252 = vmatprep.subr.mxu0 0.0
    %253 = vmatpush1.msra.mxu0 0.0
    %254 = vmatprep.subr.mxu0 0.0
    %255 = vmatpush1.msra.mxu0 0.0
    %256 = vmatprep.subr.mxu0 0.0
    %257 = vmatpush1.msra.mxu0 0.0
    %258 = vmatprep.subr.mxu0 0.0
    %259 = vmatpush1.msra.mxu0 0.0
    %260 = vmatprep.subr.mxu0 0.0
    %261 = vmatpush1.msra.mxu0 0.0
    %262 = vmatprep.subr.mxu0 0.0
    %263 = vmatpush1.msra.mxu0 0.0
    %264 = vmatprep.subr.mxu0 0.0
    %265 = vmatpush1.msra.mxu0 0.0
    %266 = vmatprep.subr.mxu0 0.0
    %267 = vmatpush1.msra.mxu0 0.0
    %268 = vmatprep.mubr.f32.mxu0 0.0
    %269 = vmatmul.mubr.f32.gmra.mrb[0].mxu0 %v202
    %v270 = vpop.f32.mrb[0].mxu0
    %v271 = vadd.f32 %v198, %v270
    %v272 = vpop.f32.mrb[0].mxu0
    %273 = vdwg.mxu0
    %v274 = vmax.f32 %v271, 0.0
    %276 = vset.pattern.permute.xlu0 0
    %277 = vperm.xlu0 %276, %v36
    %v278 = vpop.permute.xlu0 %277
    %v280 = vlaneseq
    %v281 = vshrl.u32 %v280, 7
    %v282 = vsub.s32 0, %v281
    %v283 = vrot.slane %v278, %v282
    %v285 = vsel %vm63, %v35, 0
    %287 = vmatprep.subr.mxu0 0.0
    %288 = vmatpush1.msra.mxu0 %v274
    %289 = vmatprep.subr.mxu0 0.0
    %290 = vmatpush1.msra.mxu0 0.0
    %291 = vmatprep.subr.mxu0 0.0
    %292 = vmatpush1.msra.mxu0 0.0
    %293 = vmatprep.subr.mxu0 0.0
    %294 = vmatpush1.msra.mxu0 0.0
    %295 = vmatprep.subr.mxu0 0.0
    %296 = vmatpush1.msra.mxu0 0.0
    %297 = vmatprep.subr.mxu0 0.0
    %298 = vmatpush1.msra.mxu0 0.0
    %299 = vmatprep.subr.mxu0 0.0
    %300 = vmatpush1.msra.mxu0 0.0
    %301 = vmatprep.subr.mxu0 0.0
    %302 = vmatpush1.msra.mxu0 0.0
    %303 = vmatprep.subr.mxu0 0.0
    %304 = vmatpush1.msra.mxu0 0.0
    %305 = vmatprep.subr.mxu0 0.0
    %306 = vmatpush1.msra.mxu0 0.0
    %307 = vmatprep.subr.mxu0 0.0
    %308 = vmatpush1.msra.mxu0 0.0
    %309 = vmatprep.subr.mxu0 0.0
    %310 = vmatpush1.msra.mxu0 0.0
    %311 = vmatprep.subr.mxu0 0.0
    %312 = vmatpush1.msra.mxu0 0.0
    %313 = vmatprep.subr.mxu0 0.0
    %314 = vmatpush1.msra.mxu0 0.0
    %315 = vmatprep.subr.mxu0 0.0
    %316 = vmatpush1.msra.mxu0 0.0
    %317 = vmatprep.subr.mxu0 0.0
    %318 = vmatpush1.msra.mxu0 0.0
    %319 = vmatprep.subr.mxu0 0.0
    %320 = vmatpush1.msra.mxu0 0.0
    %321 = vmatprep.subr.mxu0 0.0
    %322 = vmatpush1.msra.mxu0 0.0
    %323 = vmatprep.subr.mxu0 0.0
    %324 = vmatpush1.msra.mxu0 0.0
    %325 = vmatprep.subr.mxu0 0.0
    %326 = vmatpush1.msra.mxu0 0.0
    %327 = vmatprep.subr.mxu0 0.0
    %328 = vmatpush1.msra.mxu0 0.0
    %329 = vmatprep.subr.mxu0 0.0
    %330 = vmatpush1.msra.mxu0 0.0
    %331 = vmatprep.subr.mxu0 0.0
    %332 = vmatpush1.msra.mxu0 0.0
    %333 = vmatprep.subr.mxu0 0.0
    %334 = vmatpush1.msra.mxu0 0.0
    %335 = vmatprep.subr.mxu0 0.0
    %336 = vmatpush1.msra.mxu0 0.0
    %337 = vmatprep.subr.mxu0 0.0
    %338 = vmatpush1.msra.mxu0 0.0
    %339 = vmatprep.subr.mxu0 0.0
    %340 = vmatpush1.msra.mxu0 0.0
    %341 = vmatprep.subr.mxu0 0.0
    %342 = vmatpush1.msra.mxu0 0.0
    %343 = vmatprep.subr.mxu0 0.0
    %344 = vmatpush1.msra.mxu0 0.0
    %345 = vmatprep.subr.mxu0 0.0
    %346 = vmatpush1.msra.mxu0 0.0
    %347 = vmatprep.subr.mxu0 0.0
    %348 = vmatpush1.msra.mxu0 0.0
    %349 = vmatprep.subr.mxu0 0.0
    %350 = vmatpush1.msra.mxu0 0.0
    %351 = vmatprep.mubr.f32.mxu0 0.0
    %352 = vmatmul.mubr.f32.gmra.mrb[0].mxu0 %v285
    %v353 = vpop.f32.mrb[0].mxu0
    %v354 = vadd.f32 %v283, %v353
    %v355 = vpop.f32.mrb[0].mxu0
    %356 = vdwg.mxu0
    %v357 = vxor.u32 %v354, 2147483648
    %v358 = vmul.f32 %v357, 1.442695
    %v359 = vpow.pop %v358
    %v360 = vadd.f32 %v359, 1.0
    %v361 = vrcp.pop %v360
    %v362 = vmul.f32 1.0, %v361
    %363 = vst [vmem:[#allocation3] sm:$0x1] %v362
    // Predicated region
    $region30: #{tpu_custom_call.1} parent=1 // pred_check
      _
    $region31: #{tpu_custom_call.1} parent=1 // pred_check_branch
      %365 = sbr.rel (0) target = $region33
    $region32: #{tpu_custom_call.1} parent=1 // pred_region
      %s367 = ssub.s32 16, 16
      %368 = vsyncadd [#allocation4], %s367
      %s370 = sshll.u32 [#allocation3], 4
      %s371 = int_to_ptr.vmem [resolvable:$true] %s370
      %373 = dma.vmem_to_hbm [thread:$0]  %s371, 16, %s7, [#allocation4]
    $region33: #{tpu_custom_call.1} parent=1 // pred_fallthru
      _
    // Predicated region
    $region34: #{tpu_custom_call.1} parent=1 // pred_check
      _
    $region35: #{tpu_custom_call.1} parent=1 // pred_check_branch
      %375 = sbr.rel (0) target = $region37
    $region36: #{tpu_custom_call.1} parent=1 // pred_region
      %376 = dma.done [#allocation4], 16
    $region37: #{tpu_custom_call.1} parent=1 // pred_fallthru
      _
    %377 = vsyncpa [#allocation4], 1

</llo_original>
